<compile_context>
chip_gen: v5e
topology: v5e:2x2
jax: 0.10.0
libtpu: 0.0.40
codegen_flags: <defaults>
</compile_context>

<pallas_src>
import math

import jax
import jax.numpy as jnp
from jax.experimental import pallas as pl
from jax.experimental.pallas import tpu as pltpu


_LANE = 128                                  # lane-dense view width
_MIN_SUBLANE = {4: 8, 2: 16, 1: 32}          # packed-dtype sublane minimums (f32/bf16/i8)


def _identity_kernel(x_ref, o_ref):
    # Pure pass-through: BaseDetector.forward returns the adversarial images
    # unchanged (no concrete compute is defined by the abstract class).
    o_ref[...] = x_ref[...]


def _vmem_capacity_bytes():
    """Trace-time VMEM capacity; conservative (v7x, 64 MiB) if unavailable."""
    try:
        return int(pltpu.get_tpu_info().vmem_capacity_bytes)
    except Exception:
        return 64 * 1024 * 1024


def _tile_rows_for(rows, itemsize, target_bytes, min_sub):
    """Largest row-tile <= target_bytes, preferring an even divisor of rows."""
    if rows <= min_sub:
        return rows                                   # full extent (allowed)
    max_rows = max(min_sub,
                   (target_bytes // (_LANE * itemsize)) // min_sub * min_sub)
    if rows <= max_rows:
        return rows                                   # single block, no ragged tail
    # Prefer a tile that divides rows evenly: keeps every store an unmasked
    # full vst and every DMA full-size (matters most on v5e's single vst slot).
    t = max_rows
    while t >= min_sub:
        if rows % t == 0:
            return t
        t -= min_sub
    return max_rows                                   # ragged tail masked by Pallas


def _pallas_identity_copy(adv_images):
    """Explicit HBM->HBM copy of adv_images through the Pallas identity kernel."""
    shape = adv_images.shape
    dtype = adv_images.dtype
    itemsize = jnp.dtype(dtype).itemsize
    total = math.prod(shape)

    if total == 0 or itemsize not in _MIN_SUBLANE or total % _LANE != 0:
        # TODO(synk): <128-element tails / 8-byte dtypes: identity contract, so
        # pass through rather than paying a jnp.pad + slice (2-3x extra HBM traffic).
        return adv_images

    vmem_cap = _vmem_capacity_bytes()
    if vmem_cap >= 128 * 1024 * 1024:                 # v5e / v6e (128 MiB VMEM)
        target_block = 16 * 1024 * 1024               # 4x tile = 64 MiB working set
        vmem_limit = 96 * 1024 * 1024
    else:                                             # v7x (64 MiB VMEM per TC)
        target_block = 8 * 1024 * 1024                # 4x tile = 32 MiB working set
        vmem_limit = 32 * 1024 * 1024

    min_sub = _MIN_SUBLANE[itemsize]
    rows = total // _LANE
    tile_rows = _tile_rows_for(rows, itemsize, target_block, min_sub)
    grid = (pl.cdiv(rows, tile_rows),)

    # Lane-dense 2D view of the contiguous NCHW buffer (reshape is a bitcast).
    x2d = adv_images.reshape(rows, _LANE)

    out2d = pl.pallas_call(
        _identity_kernel,
        out_shape=jax.ShapeDtypeStruct((rows, _LANE), dtype),
        grid_spec=pltpu.PrefetchScalarGridSpec(
            num_scalar_prefetch=0,
            grid=grid,
            in_specs=[pl.BlockSpec((tile_rows, _LANE), lambda i: (i, 0))],
            out_specs=pl.BlockSpec((tile_rows, _LANE), lambda i: (i, 0)),
        ),
        compiler_params=pltpu.CompilerParams(
            dimension_semantics=("parallel",),        # shard blocks across TCs on v7x
            vmem_limit_bytes=vmem_limit,
        ),
    )(x2d)
    return out2d.reshape(shape)


def base_detector_forward(adv_images, targets=None, *, materialize_copy=False):
    """BaseDetector.forward contract: returns the adversarial images.

    Default path is a zero-cost pass-through (no HBM traffic, no kernel
    launch) — the dominant optimization for an identity contract.  Set
    materialize_copy=True to route through the Pallas identity-copy kernel
    when a distinct output buffer is explicitly required.
    """
    del targets  # abstract in the source module; accepted for signature parity
    if not materialize_copy:
        return adv_images
    return _pallas_identity_copy(adv_images)


if __name__ == "__main__":
    key = jax.random.PRNGKey(0)
    k_img, k_tgt = jax.random.split(key)

    # Small NCHW adversarial-image batch and dummy targets (boxes).
    adv_images = jax.random.uniform(k_img, (2, 4, 16, 16), dtype=jnp.float32)
    targets = jax.random.uniform(k_tgt, (2, 1, 4), dtype=jnp.float32)

    # 1) Default forward path: zero-cost short-circuit (top review item).
    out_fast = jax.block_until_ready(base_detector_forward(adv_images, targets))
    assert out_fast.shape == adv_images.shape
    assert out_fast.dtype == adv_images.dtype
    assert bool(jnp.allclose(out_fast, adv_images))

    # 2) Pallas kernel path: explicit identity copy through the TPU kernel.
    out_kernel = jax.block_until_ready(
        base_detector_forward(adv_images, targets, materialize_copy=True))
    assert out_kernel.shape == adv_images.shape
    assert out_kernel.dtype == adv_images.dtype
    assert bool(jnp.allclose(out_kernel, adv_images))

    print("KERNEL_OK")
</pallas_src>

<mosaic_0001>
module attributes {stable_mosaic.version = 11 : i64} {
  func.func @_identity_kernel(%arg0: i32, %arg1: memref<16x128xf32, #tpu.memory_space<vmem>>, %arg2: memref<16x128xf32, #tpu.memory_space<vmem>>) attributes {dimension_semantics = [#tpu.dimension_semantics<parallel>], iteration_bounds = array<i64: 1>, scalar_prefetch = 0 : i64, scratch_operands = 0 : i64, tpu.core_type = #tpu.core_type<tc>, window_params = [{transform_indices = @transform_0, window_bounds = array<i64: 16, 128>}, {transform_indices = @transform_1, window_bounds = array<i64: 16, 128>}]} {
    %c0 = arith.constant 0 : index
    %c0_0 = arith.constant 0 : index
    %0 = vector.load %arg1[%c0, %c0_0] : memref<16x128xf32, #tpu.memory_space<vmem>>, vector<16x128xf32>
    %c0_1 = arith.constant 0 : index
    %c0_2 = arith.constant 0 : index
    %1 = vector.load %arg2[%c0_1, %c0_2] : memref<16x128xf32, #tpu.memory_space<vmem>>, vector<16x128xf32>
    tpu.vector_store %arg2[%c0_1, %c0_2], %0 {strides = array<i32>} : memref<16x128xf32, #tpu.memory_space<vmem>>, vector<16x128xf32>,
    return
  }
  func.func @transform_0(%arg0: i32) -> (i32, i32) {
    %c0_i32 = arith.constant 0 : i32
    %c0_i32_0 = arith.constant 0 : i32
    return %arg0, %c0_i32 : i32, i32
  }
  func.func @transform_1(%arg0: i32) -> (i32, i32) {
    %c0_i32 = arith.constant 0 : i32
    %c0_i32_0 = arith.constant 0 : i32
    return %arg0, %c0_i32 : i32, i32
  }
}

</mosaic_0001>

<llo_original>
// kernel: tpu_custom_call.1
$region0: #{tpu_custom_call.1}
  #allocation0 [shape = 'u32[]', space=smem, size = 0x4, offset = 0x4, fixed_abs, tag = 'smem constant byte address 0x4 - core index']
  #allocation1 [shape = 'u32[72,128]{1,0:T(1,128)}', space=vmem, size = 0x9000, scoped, tag = 'internal scratch']
  %s0 = inlined_call_operand.hbm [shape: f32[16,128], index: 0, kind: input, shape index: {}]
  %s1 = inlined_call_operand.hbm [shape: f32[16,128], index: 1, kind: output, shape index: {}]
  %s2 = sld [smem:[#allocation0]]
  $region18: #{tpu_custom_call.1} parent=0
    _
  %s4 = ssub.s32 1, %s2
  %s5 = scalar_select 0, %s4, %s2
  $region1: #{tpu_custom_call.1} parent=0
    #allocation2 [shape = 'u8[8192]{0}', space=vmem, size = 0x2000, scoped, tag = 'input window, operand 0, single buffered']
    #allocation3 [shape = 's32[1]{0}', space=sflag, size = 0x4, scoped, tag = 'scoped memory for tpu_custom_call.1']
    #allocation4 [shape = 's32[1]{0}', space=sflag, size = 0x4, scoped, tag = 'scoped memory for tpu_custom_call.1']
    #allocation5 [shape = 'u8[8192]{0}', space=vmem, size = 0x2000, scoped, tag = 'output window, operand 0, single buffered']
    %6 = vsyncpa [#allocation3], 0
    %7 = vsyncpa [#allocation4], 0
    // Predicated region
    $region2: #{tpu_custom_call.1} parent=1 // pred_check
      _
    $region3: #{tpu_custom_call.1} parent=1 // pred_check_branch
      %9 = sbr.rel (0) target = $region5
    $region4: #{tpu_custom_call.1} parent=1 // pred_region
      %11 = vsyncadd [#allocation3], 0
      %s12 = sshll.u32 %s0, 4
      %s13 = int_to_ptr.hbm [resolvable:$true] %s12
      %s14 = sshll.u32 [#allocation2], 4
      %s15 = int_to_ptr.vmem [resolvable:$true] %s14
      %20 = dma.hbm_to_vmem [thread:$0]  %s13, 256, %s15, [#allocation3], 128, 128, 8
    $region5: #{tpu_custom_call.1} parent=1 // pred_fallthru
      _
    // Predicated region
    $region6: #{tpu_custom_call.1} parent=1 // pred_check
      _
    $region7: #{tpu_custom_call.1} parent=1 // pred_check_branch
      %22 = sbr.rel (0) target = $region9
    $region8: #{tpu_custom_call.1} parent=1 // pred_region
      %24 = dma.done [#allocation3], 256
    $region9: #{tpu_custom_call.1} parent=1 // pred_fallthru
      _
    %v25 = vld [vmem:[#allocation2] sm:$0xff]
    %v26 = vld [vmem:[#allocation2 + $0x8] sm:$0xff]
    %27 = vst [vmem:[#allocation5] sm:$0xff] %v25
    %28 = vst [vmem:[#allocation5 + $0x8] sm:$0xff] %v26
    // Predicated region
    $region10: #{tpu_custom_call.1} parent=1 // pred_check
      _
    $region11: #{tpu_custom_call.1} parent=1 // pred_check_branch
      %30 = sbr.rel (0) target = $region13
    $region12: #{tpu_custom_call.1} parent=1 // pred_region
      %32 = vsyncadd [#allocation4], 0
      %s33 = sshll.u32 [#allocation5], 4
      %s34 = int_to_ptr.vmem [resolvable:$true] %s33
      %s35 = sshll.u32 %s1, 4
      %s36 = int_to_ptr.hbm [resolvable:$true] %s35
      %41 = dma.vmem_to_hbm [thread:$0]  %s34, 256, %s36, [#allocation4], 128, 128, 8
    $region13: #{tpu_custom_call.1} parent=1 // pred_fallthru
      _
    // Predicated region
    $region14: #{tpu_custom_call.1} parent=1 // pred_check
      _
    $region15: #{tpu_custom_call.1} parent=1 // pred_check_branch
      %43 = sbr.rel (0) target = $region17
    $region16: #{tpu_custom_call.1} parent=1 // pred_region
      %45 = dma.done [#allocation4], 256
    $region17: #{tpu_custom_call.1} parent=1 // pred_fallthru
      _
    %46 = vsyncpa [#allocation3], 1
    %47 = vsyncpa [#allocation4], 1

</llo_original>
